<compile_context>
chip_gen: v5e
topology: v5e:2x2
jax: 0.10.0
libtpu: 0.0.40
codegen_flags: <defaults>
</compile_context>

<pallas_src>
import functools
import math

import jax
import jax.numpy as jnp
from jax.experimental import pallas as pl
from jax.experimental.pallas import tpu as pltpu


_SIMPLE_MAX_BYTES = 2 * 1024 * 1024      # below this: single-block simple path
_CHUNK_F32_BYTES = 512 * 1024            # f32 temporaries per in-kernel chunk
_LANE_CANDIDATES = (1024, 512, 256, 128)


# --------------------------------------------------------------------------
# Kernels
# --------------------------------------------------------------------------
def _sqdiff_simple_kernel(s_ref, t_ref, o_ref, *, native_diff):
    """Whole-array (single block) sum of (s - t)^2 over the sublane axis."""
    if native_diff:
        d = (s_ref[...] - t_ref[...]).astype(jnp.float32)
    else:
        d = s_ref[...].astype(jnp.float32) - t_ref[...].astype(jnp.float32)
    o_ref[...] = jnp.sum(d * d, axis=0, keepdims=True)[None]


def _sqdiff_chunked_kernel(s_ref, t_ref, o_ref, *, rows_total, row_tile,
                           chunk_rows, need_mask, native_diff):
    """Per-block partial sum of (s - t)^2 reduced to an (8, L) slab.

    The (row_tile, L) VMEM block is consumed in sublane chunks of
    `chunk_rows` rows so the f32 temporaries stay ~512 KiB regardless of how
    large the streamed DMA block is.
    """
    L = o_ref.shape[-1]
    n_chunks = row_tile // chunk_rows            # static; chunk_rows | row_tile
    block_row0 = pl.program_id(0) * row_tile     # scalar (int32)

    def body(i, acc):
        r0 = pl.multiple_of(i * chunk_rows, chunk_rows)
        s = s_ref[pl.ds(r0, chunk_rows), :]
        t = t_ref[pl.ds(r0, chunk_rows), :]
        if native_diff:
            d = (s - t).astype(jnp.float32)
        else:
            d = s.astype(jnp.float32) - t.astype(jnp.float32)
        sq = d * d
        if need_mask:  # only traced when rows_total % row_tile != 0 (static)
            ridx = (block_row0 + r0
                    + jax.lax.broadcasted_iota(jnp.int32, sq.shape, 0))
            sq = jnp.where(ridx < rows_total, sq, 0.0)
        # Collapse chunk_rows -> 8 sublanes with pure cross-vreg VPU adds
        # (layout-preserving reshape; no in-vreg XLU collapse).
        part = jnp.sum(jnp.reshape(sq, (chunk_rows // 8, 8, L)), axis=0)
        return acc + part

    acc0 = jnp.zeros((8, L), jnp.float32)
    acc = jax.lax.fori_loop(0, n_chunks, body, acc0,
                            unroll=True if n_chunks <= 8 else False)
    o_ref[...] = acc[None]                       # dense (1, 8, L) store


# --------------------------------------------------------------------------
# Tiling / hardware heuristics
# --------------------------------------------------------------------------
def _hw_config():
    """(block_budget_bytes_per_input, vmem_limit_bytes), generation-aware."""
    try:
        vmem = int(pltpu.get_tpu_info().vmem_capacity_bytes)
    except Exception:
        vmem = None
    if vmem is not None and vmem > 64 * 1024 * 1024:
        # v5e / v6e: 128 MiB physical VMEM -> large streamed blocks.
        return vmem, 8 * 1024 * 1024, 96 * 1024 * 1024
    # v7x-class (64 MiB VMEM per TC) or unknown hardware: conservative.
    return vmem, 4 * 1024 * 1024, 48 * 1024 * 1024


def _use_native_diff(dtype, vmem_capacity):
    """Drop one f32 cast/elem only where the VPU is the binding resource
    (bf16/f16 inputs on a v7x-class chip); keep full f32 parity elsewhere."""
    is_half = jnp.issubdtype(dtype, jnp.floating) and jnp.dtype(dtype).itemsize == 2
    return bool(is_half and vmem_capacity is not None
                and vmem_capacity <= 64 * 1024 * 1024)


def _sublane_packing(itemsize):
    return {4: 8, 2: 16, 1: 32}.get(itemsize, 8)


def _pick_lane_width(n_elem):
    for L in _LANE_CANDIDATES:
        if n_elem % L == 0:
            return L
    return None


def _plan_tiles(rows, L, itemsize, block_budget):
    """Row tiling for the chunked path: (row_tile, chunk_rows, grid, need_mask)."""
    packing = _sublane_packing(itemsize)
    chunk_rows = max(packing, (_CHUNK_F32_BYTES // (L * 4)) // packing * packing)
    # Largest block whose per-step HBM traffic matches the per-chip budget.
    row_tile = max(chunk_rows,
                   (block_budget // (L * itemsize)) // chunk_rows * chunk_rows)
    # Keep >= 2 grid steps so "parallel" can shard rows across TCs (v7x).
    half = (rows + 1) // 2
    half = ((half + chunk_rows - 1) // chunk_rows) * chunk_rows
    row_tile = min(row_tile, half)
    # Prefer a row tile that divides rows exactly (no tail mask on the VPU).
    if rows % row_tile:
        lo = max(chunk_rows, (row_tile // 2 // chunk_rows) * chunk_rows)
        for cand in range(row_tile, lo - 1, -chunk_rows):
            if rows % cand == 0:
                row_tile = cand
                break
    grid = pl.cdiv(rows, row_tile)
    return row_tile, chunk_rows, grid, (rows % row_tile) != 0


# --------------------------------------------------------------------------
# Per-level MSE via Pallas
# --------------------------------------------------------------------------
def _mse_mean_pallas(preds_S, preds_T):
    """mean((preds_S - preds_T)^2) over all elements, via a Pallas kernel."""
    assert preds_S.shape == preds_T.shape, "student/teacher feature shapes differ"
    n_elem = math.prod(preds_S.shape)

    dtype = jnp.promote_types(preds_S.dtype, preds_T.dtype)
    flat_s = preds_S.astype(dtype).reshape(-1)
    flat_t = preds_T.astype(dtype).reshape(-1)
    itemsize = jnp.dtype(dtype).itemsize

    # Lane-dense flatten: L is always a multiple of 128.  If nothing divides
    # the element count (rare, tiny pyramid tails), zero-pad both tensors; the
    # padded elements diff to 0 so neither the sum nor the mask logic changes.
    L = _pick_lane_width(n_elem)
    if L is None:
        L = 128
        pad = (-n_elem) % L
        flat_s = jnp.pad(flat_s, (0, pad))
        flat_t = jnp.pad(flat_t, (0, pad))
    rows = flat_s.shape[0] // L
    s2 = flat_s.reshape(rows, L)
    t2 = flat_t.reshape(rows, L)

    vmem_cap, block_budget, vmem_limit = _hw_config()
    native_diff = _use_native_diff(dtype, vmem_cap)

    if rows * L * itemsize <= _SIMPLE_MAX_BYTES:
        # Small level: one block = whole array, one grid step.
        kernel = functools.partial(_sqdiff_simple_kernel, native_diff=native_diff)
        partials = pl.pallas_call(
            kernel,
            out_shape=jax.ShapeDtypeStruct((1, 1, L), jnp.float32),
            grid=(1,),
            in_specs=[pl.BlockSpec((rows, L), lambda i: (0, 0)),
                      pl.BlockSpec((rows, L), lambda i: (0, 0))],
            out_specs=pl.BlockSpec((1, 1, L), lambda i: (0, 0, 0)),
            compiler_params=pltpu.CompilerParams(
                dimension_semantics=("arbitrary",),
                vmem_limit_bytes=vmem_limit),
        )(s2, t2)
    else:
        row_tile, chunk_rows, grid, need_mask = _plan_tiles(
            rows, L, itemsize, block_budget)
        kernel = functools.partial(
            _sqdiff_chunked_kernel, rows_total=rows, row_tile=row_tile,
            chunk_rows=chunk_rows, need_mask=need_mask, native_diff=native_diff)
        partials = pl.pallas_call(
            kernel,
            out_shape=jax.ShapeDtypeStruct((grid, 8, L), jnp.float32),
            grid=(grid,),
            in_specs=[pl.BlockSpec((row_tile, L), lambda i: (i, 0)),
                      pl.BlockSpec((row_tile, L), lambda i: (i, 0))],
            out_specs=pl.BlockSpec((1, 8, L), lambda i: (i, 0, 0)),
            compiler_params=pltpu.CompilerParams(
                dimension_semantics=("parallel",),   # per-step outputs => safe
                vmem_limit_bytes=vmem_limit),
        )(s2, t2)

    # Final collapse of the tiny partial tensor: one cheap XLA reduce.
    return jnp.sum(partials) / n_elem


# --------------------------------------------------------------------------
# Module forward
# --------------------------------------------------------------------------
def multi_scale_feats_distill(ms_stu, ms_tea, *, lvls=4, compress="mean",
                              loss_mean_weight=1.0, dist=False):
    """Pallas implementation of MultiScaleFeatsDistill.forward (dist=False)."""
    if dist:
        # TODO(synk): dist=True branch (MSEWithDist: random spatial mask +
        # learned 3x3-conv "generation" network) needs module weights and RNG
        # state; not translated here.
        raise NotImplementedError("dist=True path not implemented")
    loss = jnp.float32(0.0)
    for idx in range(lvls):
        loss = loss + _mse_mean_pallas(ms_stu[idx], ms_tea[idx])
    if compress == "mean":
        loss = loss / lvls * loss_mean_weight
    else:
        loss = loss * loss_mean_weight
    return loss


def _reference(ms_stu, ms_tea, lvls, compress, loss_mean_weight):
    """Pure-JAX reference mirroring the PyTorch forward (dist=False)."""
    loss = 0.0
    for idx in range(lvls):
        d = ms_stu[idx].astype(jnp.float32) - ms_tea[idx].astype(jnp.float32)
        loss = loss + jnp.mean(d * d)
    if compress == "mean":
        loss = loss / lvls * loss_mean_weight
    else:
        loss = loss * loss_mean_weight
    return loss


if __name__ == "__main__":
    key = jax.random.PRNGKey(0)
    lvls = 4
    N, C, base = 2, 4, 16

    ms_stu, ms_tea = [], []
    for lvl in range(lvls):
        key, k1, k2 = jax.random.split(key, 3)
        h = w = base // (2 ** lvl)            # 16, 8, 4, 2 (FPN-style pyramid)
        ms_stu.append(jax.random.normal(k1, (N, C, h, w), dtype=jnp.float32))
        ms_tea.append(jax.random.normal(k2, (N, C, h, w), dtype=jnp.float32))

    out = multi_scale_feats_distill(ms_stu, ms_tea, lvls=lvls,
                                    compress="mean", loss_mean_weight=1.0)
    out = jax.block_until_ready(out)

    ref = _reference(ms_stu, ms_tea, lvls, "mean", 1.0)
    assert jnp.allclose(out, ref, rtol=1e-5, atol=1e-6), (out, ref)

    # Also exercise the multi-block chunked path (grid > 1, tail mask) once.
    key, k1, k2 = jax.random.split(key, 3)
    big_s = jax.random.normal(k1, (2, 499, 32, 32), dtype=jnp.float32)
    big_t = jax.random.normal(k2, (2, 499, 32, 32), dtype=jnp.float32)
    big_out = jax.block_until_ready(_mse_mean_pallas(big_s, big_t))
    big_ref = jnp.mean((big_s.astype(jnp.float32) - big_t.astype(jnp.float32)) ** 2)
    assert jnp.allclose(big_out, big_ref, rtol=1e-4, atol=1e-6), (big_out, big_ref)

    print("KERNEL_OK")
</pallas_src>

<mosaic_0001>
module attributes {stable_mosaic.version = 11 : i64} {
  func.func @_sqdiff_simple_kernel(%arg0: i32, %arg1: memref<2x1024xf32, #tpu.memory_space<vmem>>, %arg2: memref<2x1024xf32, #tpu.memory_space<vmem>>, %arg3: memref<1x1x1024xf32, #tpu.memory_space<vmem>>) attributes {dimension_semantics = [#tpu.dimension_semantics<arbitrary>], iteration_bounds = array<i64: 1>, scalar_prefetch = 0 : i64, scratch_operands = 0 : i64, tpu.core_type = #tpu.core_type<tc>, window_params = [{pipeline_mode = #tpu.pipeline_mode<synchronous>, transform_indices = @transform_0, window_bounds = array<i64: 2, 1024>}, {pipeline_mode = #tpu.pipeline_mode<synchronous>, transform_indices = @transform_1, window_bounds = array<i64: 2, 1024>}, {pipeline_mode = #tpu.pipeline_mode<synchronous>, transform_indices = @transform_2, window_bounds = array<i64: 1, 1, 1024>}]} {
    %c0 = arith.constant 0 : index
    %c0_0 = arith.constant 0 : index
    %0 = vector.load %arg1[%c0, %c0_0] : memref<2x1024xf32, #tpu.memory_space<vmem>>, vector<2x1024xf32>
    %c0_1 = arith.constant 0 : index
    %c0_2 = arith.constant 0 : index
    %1 = vector.load %arg2[%c0_1, %c0_2] : memref<2x1024xf32, #tpu.memory_space<vmem>>, vector<2x1024xf32>
    %2 = arith.subf %0, %1 : vector<2x1024xf32>
    %3 = arith.mulf %2, %2 : vector<2x1024xf32>
    %cst = arith.constant dense<0.000000e+00> : vector<1024xf32>
    %4 = vector.multi_reduction <add>, %3, %cst [0] : vector<2x1024xf32> to vector<1024xf32>
    %5 = vector.shape_cast %4 : vector<1024xf32> to vector<1x1024xf32>
    %6 = vector.shape_cast %5 : vector<1x1024xf32> to vector<1x1x1024xf32>
    %c0_3 = arith.constant 0 : index
    %c0_4 = arith.constant 0 : index
    %c0_5 = arith.constant 0 : index
    %7 = vector.load %arg3[%c0_3, %c0_4, %c0_5] : memref<1x1x1024xf32, #tpu.memory_space<vmem>>, vector<1x1x1024xf32>
    tpu.vector_store %arg3[%c0_3, %c0_4, %c0_5], %6 {strides = array<i32>} : memref<1x1x1024xf32, #tpu.memory_space<vmem>>, vector<1x1x1024xf32>,
    return
  }
  func.func @transform_0(%arg0: i32) -> (i32, i32) {
    %c0_i32 = arith.constant 0 : i32
    %c0_i32_0 = arith.constant 0 : i32
    %c0_i32_1 = arith.constant 0 : i32
    return %c0_i32, %c0_i32_0 : i32, i32
  }
  func.func @transform_1(%arg0: i32) -> (i32, i32) {
    %c0_i32 = arith.constant 0 : i32
    %c0_i32_0 = arith.constant 0 : i32
    %c0_i32_1 = arith.constant 0 : i32
    return %c0_i32, %c0_i32_0 : i32, i32
  }
  func.func @transform_2(%arg0: i32) -> (i32, i32, i32) {
    %c0_i32 = arith.constant 0 : i32
    %c0_i32_0 = arith.constant 0 : i32
    %c0_i32_1 = arith.constant 0 : i32
    %c0_i32_2 = arith.constant 0 : i32
    return %c0_i32, %c0_i32_0, %c0_i32_1 : i32, i32, i32
  }
}

</mosaic_0001>

<llo_original>
// kernel: tpu_custom_call.1
$region0: #{tpu_custom_call.1}
  #allocation0 [shape = 'u32[]', space=smem, size = 0x4, offset = 0x4, fixed_abs, tag = 'smem constant byte address 0x4 - core index']
  #allocation1 [shape = 'u32[72,128]{1,0:T(1,128)}', space=vmem, size = 0x9000, scoped, tag = 'internal scratch']
  %s0 = inlined_call_operand.hbm [shape: f32[2,1024], index: 0, kind: input, shape index: {}]
  %s1 = inlined_call_operand.hbm [shape: f32[2,1024], index: 1, kind: input, shape index: {}]
  %s2 = inlined_call_operand.hbm [shape: f32[1,1,1024], index: 2, kind: output, shape index: {}]
  %s3 = sld [smem:[#allocation0]]
  $region26: #{tpu_custom_call.1} parent=0
    _
  %s5 = ssub.s32 1, %s3
  %s6 = scalar_select 0, %s5, %s3
  $region1: #{tpu_custom_call.1} parent=0
    #allocation2 [shape = 'u8[8192]{0}', space=vmem, size = 0x2000, scoped, tag = 'input window, operand 0, single buffered']
    #allocation3 [shape = 's32[1]{0}', space=sflag, size = 0x4, scoped, tag = 'scoped memory for tpu_custom_call.1']
    #allocation4 [shape = 's32[1]{0}', space=sflag, size = 0x4, scoped, tag = 'scoped memory for tpu_custom_call.1']
    #allocation5 [shape = 'u8[8192]{0}', space=vmem, size = 0x2000, scoped, tag = 'input window, operand 1, single buffered']
    #allocation6 [shape = 's32[1]{0}', space=sflag, size = 0x4, scoped, tag = 'scoped memory for tpu_custom_call.1']
    #allocation7 [shape = 'u8[4096]{0}', space=vmem, size = 0x1000, scoped, tag = 'output window, operand 0, single buffered']
    %7 = vsyncpa [#allocation3], 0
    %8 = vsyncpa [#allocation6], 0
    %9 = vsyncpa [#allocation4], 0
    // Predicated region
    $region2: #{tpu_custom_call.1} parent=1 // pred_check
      _
    $region3: #{tpu_custom_call.1} parent=1 // pred_check_branch
      %11 = sbr.rel (0) target = $region5
    $region4: #{tpu_custom_call.1} parent=1 // pred_region
      %13 = vsyncadd [#allocation3], 0
      %s15 = sshll.u32 %s0, 4
      %s16 = int_to_ptr.hbm [resolvable:$true] %s15
      %s17 = sshll.u32 [#allocation2], 4
      %s18 = int_to_ptr.vmem [resolvable:$true] %s17
      %20 = dma.hbm_to_vmem [thread:$0]  %s16, 256, %s18, [#allocation3]
    $region5: #{tpu_custom_call.1} parent=1 // pred_fallthru
      _
    // Predicated region
    $region6: #{tpu_custom_call.1} parent=1 // pred_check
      _
    $region7: #{tpu_custom_call.1} parent=1 // pred_check_branch
      %22 = sbr.rel (0) target = $region9
    $region8: #{tpu_custom_call.1} parent=1 // pred_region
      %24 = vsyncadd [#allocation6], 0
      %s26 = sshll.u32 %s1, 4
      %s27 = int_to_ptr.hbm [resolvable:$true] %s26
      %s28 = sshll.u32 [#allocation5], 4
      %s29 = int_to_ptr.vmem [resolvable:$true] %s28
      %31 = dma.hbm_to_vmem [thread:$0]  %s27, 256, %s29, [#allocation6]
    $region9: #{tpu_custom_call.1} parent=1 // pred_fallthru
      _
    // Predicated region
    $region10: #{tpu_custom_call.1} parent=1 // pred_check
      _
    $region11: #{tpu_custom_call.1} parent=1 // pred_check_branch
      %33 = sbr.rel (0) target = $region13
    $region12: #{tpu_custom_call.1} parent=1 // pred_region
      %35 = dma.done [#allocation3], 256
    $region13: #{tpu_custom_call.1} parent=1 // pred_fallthru
      _
    // Predicated region
    $region14: #{tpu_custom_call.1} parent=1 // pred_check
      _
    $region15: #{tpu_custom_call.1} parent=1 // pred_check_branch
      %37 = sbr.rel (0) target = $region17
    $region16: #{tpu_custom_call.1} parent=1 // pred_region
      %39 = dma.done [#allocation6], 256
    $region17: #{tpu_custom_call.1} parent=1 // pred_fallthru
      _
    %v40 = vld [vmem:[#allocation2] sm:$0xff]
    %v41 = vld [vmem:[#allocation2 + $0x8] sm:$0xff]
    %v42 = vld [vmem:[#allocation5] sm:$0xff]
    %v43 = vld [vmem:[#allocation5 + $0x8] sm:$0xff]
    %v44 = vsub.f32 %v40, %v42
    %v45 = vsub.f32 %v41, %v43
    %v46 = vmul.f32 %v44, %v44
    %v47 = vmul.f32 %v45, %v45
    %50 = vst [vmem:[#allocation1] ss:$4 sm:$0xff] %v46
    %s51 = scalar_lea.vmem [#allocation1], 32
    %52 = vst [vmem:[%s51] ss:$4 sm:$0xff] %v47
    %v53 = vld.sshfl [vmem:[#allocation1] sm:$0xff pattern:$0x73625140]
    %v54 = vld.sshfl [vmem:[#allocation1 + $0x8] sm:$0xff pattern:$0x73625140]
    %v55 = vld.sshfl [vmem:[#allocation1 + $0x10] sm:$0xff pattern:$0x73625140]
    %v56 = vld.sshfl [vmem:[#allocation1 + $0x18] sm:$0xff pattern:$0x73625140]
    %v57 = vld.sshfl [vmem:[#allocation1 + $0x20] sm:$0xff pattern:$0x73625140]
    %v58 = vld.sshfl [vmem:[#allocation1 + $0x28] sm:$0xff pattern:$0x73625140]
    %v59 = vld.sshfl [vmem:[#allocation1 + $0x30] sm:$0xff pattern:$0x73625140]
    %v60 = vld.sshfl [vmem:[#allocation1 + $0x38] sm:$0xff pattern:$0x73625140]
    %vm69 = vcmask 1041408
    %v70 = vsel %vm69, %v53, 0.0
    %v71 = vrot.slane %v70, 4
    %v72 = vadd.f32 %v70, %v71
    %v73 = vrot.slane %v72, 2
    %v74 = vadd.f32 %v72, %v73
    %v75 = vrot.slane %v74, 1
    %v76 = vadd.f32 %v74, %v75
    %v77 = vsel %vm69, %v54, 0.0
    %v78 = vrot.slane %v77, 4
    %v79 = vadd.f32 %v77, %v78
    %v80 = vrot.slane %v79, 2
    %v81 = vadd.f32 %v79, %v80
    %v82 = vrot.slane %v81, 1
    %v83 = vadd.f32 %v81, %v82
    %v84 = vsel %vm69, %v55, 0.0
    %v85 = vrot.slane %v84, 4
    %v86 = vadd.f32 %v84, %v85
    %v87 = vrot.slane %v86, 2
    %v88 = vadd.f32 %v86, %v87
    %v89 = vrot.slane %v88, 1
    %v90 = vadd.f32 %v88, %v89
    %v91 = vsel %vm69, %v56, 0.0
    %v92 = vrot.slane %v91, 4
    %v93 = vadd.f32 %v91, %v92
    %v94 = vrot.slane %v93, 2
    %v95 = vadd.f32 %v93, %v94
    %v96 = vrot.slane %v95, 1
    %v97 = vadd.f32 %v95, %v96
    %v98 = vsel %vm69, %v57, 0.0
    %v99 = vrot.slane %v98, 4
    %v100 = vadd.f32 %v98, %v99
    %v101 = vrot.slane %v100, 2
    %v102 = vadd.f32 %v100, %v101
    %v103 = vrot.slane %v102, 1
    %v104 = vadd.f32 %v102, %v103
    %v105 = vsel %vm69, %v58, 0.0
    %v106 = vrot.slane %v105, 4
    %v107 = vadd.f32 %v105, %v106
    %v108 = vrot.slane %v107, 2
    %v109 = vadd.f32 %v107, %v108
    %v110 = vrot.slane %v109, 1
    %v111 = vadd.f32 %v109, %v110
    %v112 = vsel %vm69, %v59, 0.0
    %v113 = vrot.slane %v112, 4
    %v114 = vadd.f32 %v112, %v113
    %v115 = vrot.slane %v114, 2
    %v116 = vadd.f32 %v114, %v115
    %v117 = vrot.slane %v116, 1
    %v118 = vadd.f32 %v116, %v117
    %v119 = vsel %vm69, %v60, 0.0
    %v120 = vrot.slane %v119, 4
    %v121 = vadd.f32 %v119, %v120
    %v122 = vrot.slane %v121, 2
    %v123 = vadd.f32 %v121, %v122
    %v124 = vrot.slane %v123, 1
    %v125 = vadd.f32 %v123, %v124
    %v134 = vrot.slane %v83, 7
    %v135 = vrot.slane %v90, 6
    %v136 = vrot.slane %v97, 5
    %v137 = vrot.slane %v104, 4
    %v138 = vrot.slane %v111, 3
    %v139 = vrot.slane %v118, 2
    %v140 = vrot.slane %v125, 1
    %vm141 = vcmask 1040384
    %v142 = vsel %vm141, %v76, %v134
    %vm143 = vcmask 1042434
    %v144 = vsel %vm143, %v135, %v136
    %v145 = vsel %vm69, %v142, %v144
    %vm146 = vcmask 1044484
    %v147 = vsel %vm146, %v137, %v138
    %vm148 = vcmask 1046534
    %v149 = vsel %vm148, %v139, %v140
    %vm150 = vcmask 1045508
    %v151 = vsel %vm150, %v147, %v149
    %vm152 = vcmask 1043456
    %v153 = vsel %vm152, %v145, %v151
    %155 = vst [vmem:[#allocation7] sm:$0xff] %v153
    // Predicated region
    $region18: #{tpu_custom_call.1} parent=1 // pred_check
      _
    $region19: #{tpu_custom_call.1} parent=1 // pred_check_branch
      %157 = sbr.rel (0) target = $region21
    $region20: #{tpu_custom_call.1} parent=1 // pred_region
      %159 = vsyncadd [#allocation4], 0
      %s161 = sshll.u32 [#allocation7], 4
      %s162 = int_to_ptr.vmem [resolvable:$true] %s161
      %s163 = sshll.u32 %s2, 4
      %s164 = int_to_ptr.hbm [resolvable:$true] %s163
      %166 = dma.vmem_to_hbm [thread:$0]  %s162, 128, %s164, [#allocation4]
    $region21: #{tpu_custom_call.1} parent=1 // pred_fallthru
      _
    // Predicated region
    $region22: #{tpu_custom_call.1} parent=1 // pred_check
      _
    $region23: #{tpu_custom_call.1} parent=1 // pred_check_branch
      %168 = sbr.rel (0) target = $region25
    $region24: #{tpu_custom_call.1} parent=1 // pred_region
      %170 = dma.done [#allocation4], 128
    $region25: #{tpu_custom_call.1} parent=1 // pred_fallthru
      _
    %171 = vsyncpa [#allocation3], 1
    %172 = vsyncpa [#allocation6], 1
    %173 = vsyncpa [#allocation4], 1

</llo_original>
